<compile_context>
chip_gen: v7x
topology: tpu7x:2x2x1
jax: 0.10.0
libtpu: 0.0.40
codegen_flags: <defaults>
</compile_context>

<pallas_src>
import functools
import math

import numpy as np
import jax
import jax.numpy as jnp
from jax.experimental import pallas as pl
from jax.experimental.pallas import tpu as pltpu


# Footprint below which everything (x, weights, bias, out) runs in ONE grid step.
# Conservative w.r.t. v7x's 32 MiB scoped-VMEM default (v5e/v6e have 128 MiB).
_SINGLE_STEP_VMEM_BUDGET = 8 * 1024 * 1024


# ----------------------------------------------------------------------------
# Kernels
# ----------------------------------------------------------------------------
def _ensemble_single_step_kernel(x_ref, w_ref, b_ref, o_ref):
    """One grid step over the whole ensemble (3-D per-model x).

    x: (M, B, K)  w: (M, K, O)  b: (M, 1, O)  o: (M, B, O).  M (n_models) is tiny,
    so a static unroll of 2-D MXU matmuls inside one step avoids all per-step
    grid overhead while keeping every output store lane-dense.
    """
    n_models = x_ref.shape[0]
    for m in range(n_models):  # static unroll
        acc = jnp.dot(x_ref[m], w_ref[m], preferred_element_type=jnp.float32)
        o_ref[m] = (acc + b_ref[m]).astype(o_ref.dtype)


def _shared_x_single_step_kernel(x_ref, w_ref, b_ref, o_ref, *, n_models, size_out):
    """One grid step, shared x: models folded into the MXU N dimension.

    x: (B, K)  w: (K, M*O)  b: (1, M*O)  o: (M, B, O).  One wide matmul
    ((B,K)@(K,M*O)) + fused bias add, then static lane slices per model.
    """
    acc = jnp.dot(x_ref[...], w_ref[...], preferred_element_type=jnp.float32)
    acc = acc + b_ref[...]
    for m in range(n_models):  # static unroll, static lane slices
        o_ref[m] = acc[:, m * size_out:(m + 1) * size_out].astype(o_ref.dtype)


def _per_model_grid_kernel(x_ref, w_ref, b_ref, o_ref):
    """Fallback (only when the single-step footprint would overflow VMEM)."""
    acc = jnp.dot(x_ref[...], w_ref[...], preferred_element_type=jnp.float32)
    o_ref[...] = (acc + b_ref[...]).astype(o_ref.dtype)


# ----------------------------------------------------------------------------
# Forward wrappers (one fused pallas_call each)
# ----------------------------------------------------------------------------
@jax.jit
def _forward_per_model_single(x, weights, bias):
    """3-D x, single grid step over the whole ensemble."""
    n_models, size_in, size_out = weights.shape
    batch = x.shape[1]
    return pl.pallas_call(
        _ensemble_single_step_kernel,
        grid=(1,),
        in_specs=[
            pl.BlockSpec((n_models, batch, size_in), lambda i: (0, 0, 0)),
            pl.BlockSpec((n_models, size_in, size_out), lambda i: (0, 0, 0)),
            pl.BlockSpec((n_models, 1, size_out), lambda i: (0, 0, 0)),
        ],
        out_specs=pl.BlockSpec((n_models, batch, size_out), lambda i: (0, 0, 0)),
        out_shape=jax.ShapeDtypeStruct((n_models, batch, size_out), jnp.float32),
    )(x, weights, bias)


@functools.partial(jax.jit, static_argnames=("n_models", "size_out"))
def _forward_shared_single(x, w_flat, b_flat, *, n_models, size_out):
    """2-D shared x, models folded into N: one (B,K)@(K,M*O) matmul."""
    batch, size_in = x.shape
    kernel = functools.partial(
        _shared_x_single_step_kernel, n_models=n_models, size_out=size_out)
    return pl.pallas_call(
        kernel,
        grid=(1,),
        in_specs=[
            pl.BlockSpec((batch, size_in), lambda i: (0, 0)),
            pl.BlockSpec((size_in, n_models * size_out), lambda i: (0, 0)),
            pl.BlockSpec((1, n_models * size_out), lambda i: (0, 0)),
        ],
        out_specs=pl.BlockSpec((n_models, batch, size_out), lambda i: (0, 0, 0)),
        out_shape=jax.ShapeDtypeStruct((n_models, batch, size_out), jnp.float32),
    )(x, w_flat, b_flat)


@jax.jit
def _forward_grid(x, weights, bias):
    """Size-aware fallback: one model per grid step (handles 2-D or 3-D x)."""
    n_models, size_in, size_out = weights.shape
    batch = x.shape[-2]
    if x.ndim == 2:
        # Shared x: re-read block 0 for every model (no HBM broadcast).
        x_spec = pl.BlockSpec((batch, size_in), lambda m: (0, 0))
    else:
        x_spec = pl.BlockSpec((None, batch, size_in), lambda m: (m, 0, 0))

    per_step_bytes = 4 * (batch * size_in + size_in * size_out
                          + size_out + batch * size_out)
    # Explicit VMEM limit for the scaled-up case; capped at v7x physical VMEM.
    vmem_limit = int(min(64 * 1024 * 1024,
                         max(32 * 1024 * 1024, 4 * per_step_bytes)))

    return pl.pallas_call(
        _per_model_grid_kernel,
        grid=(n_models,),
        in_specs=[
            x_spec,
            pl.BlockSpec((None, size_in, size_out), lambda m: (m, 0, 0)),
            pl.BlockSpec((None, 1, size_out), lambda m: (m, 0, 0)),
        ],
        out_specs=pl.BlockSpec((None, batch, size_out), lambda m: (m, 0, 0)),
        out_shape=jax.ShapeDtypeStruct((n_models, batch, size_out), jnp.float32),
        compiler_params=pltpu.CompilerParams(
            dimension_semantics=("parallel",),
            vmem_limit_bytes=vmem_limit),
    )(x, weights, bias)


# ----------------------------------------------------------------------------
# MultiLinearLayer equivalent
# ----------------------------------------------------------------------------
class MultiLinearLayerPallas:
    def __init__(self, n_models, size_in, size_out, key):
        self.n_models, self.size_in, self.size_out = n_models, size_in, size_out
        # kaiming_uniform_(a=sqrt(5)) on a (n_models, size_in, size_out) tensor:
        # torch's fan_in for a 3-D tensor = size_in * size_out,
        # bound = sqrt(6 / ((1 + a^2) * fan_in)) = 1 / sqrt(fan_in)
        fan_in = size_in * size_out
        bound = 1.0 / math.sqrt(fan_in)
        weights = jax.random.uniform(
            key, (n_models, size_in, size_out),
            minval=-bound, maxval=bound, dtype=jnp.float32)
        bias = jnp.zeros((n_models, 1, size_out), dtype=jnp.float32)
        self.set_params(weights, bias)

    def set_params(self, weights=None, bias=None):
        """Set parameters and refresh the cached model-folded layouts."""
        if weights is not None:
            self.weights = weights
            # (M, K, O) -> (K, M*O): cached once; used by the shared-x fast path.
            self.weights_flat = jnp.transpose(weights, (1, 0, 2)).reshape(
                self.size_in, self.n_models * self.size_out)
        if bias is not None:
            self.bias = bias
            self.bias_flat = jnp.reshape(bias, (1, self.n_models * self.size_out))

    def set_bias(self, bias):
        self.set_params(bias=bias)

    def __call__(self, x):
        batch = x.shape[-2]
        out_elems = self.n_models * batch * self.size_out
        footprint = 4 * (x.size + self.weights.size + self.bias.size + out_elems)
        if footprint > _SINGLE_STEP_VMEM_BUDGET:
            # Scaled-up case: fall back to the per-model grid.
            return _forward_grid(x, self.weights, self.bias)
        if x.ndim == 2:
            return _forward_shared_single(
                x, self.weights_flat, self.bias_flat,
                n_models=self.n_models, size_out=self.size_out)
        return _forward_per_model_single(x, self.weights, self.bias)


# ----------------------------------------------------------------------------
# Pure-JAX reference (mirrors the PyTorch forward) for validation.
# ----------------------------------------------------------------------------
def reference_forward(x, weights, bias):
    if x.ndim == 2:
        out = jnp.einsum("bi,mio->mbo", x, weights,
                         preferred_element_type=jnp.float32)
    else:
        out = jnp.einsum("mbi,mio->mbo", x, weights,
                         preferred_element_type=jnp.float32)
    return out + bias


# ----------------------------------------------------------------------------
# Main
# ----------------------------------------------------------------------------
if __name__ == "__main__":
    key = jax.random.PRNGKey(0)
    k_w, k_b, k_x = jax.random.split(key, 3)

    # Small shapes; size_out=128 keeps every per-model output tile lane-dense.
    n_models, batch, size_in, size_out = 4, 16, 32, 128

    layer = MultiLinearLayerPallas(n_models, size_in, size_out, k_w)
    # Non-zero bias so the fused broadcast-add is actually exercised.
    layer.set_bias(0.1 * jax.random.normal(
        k_b, (n_models, 1, size_out), dtype=jnp.float32))

    # 3-D input: per-model activations -> single-step ensemble kernel.
    x3 = jax.random.normal(k_x, (n_models, batch, size_in), dtype=jnp.float32)
    out3 = jax.block_until_ready(layer(x3))
    ref3 = reference_forward(x3, layer.weights, layer.bias)
    np.testing.assert_allclose(np.asarray(out3), np.asarray(ref3),
                               rtol=2e-3, atol=2e-3)

    # 2-D input: shared across the ensemble -> models folded into the MXU N dim.
    x2 = x3[0]
    out2 = jax.block_until_ready(layer(x2))
    ref2 = reference_forward(x2, layer.weights, layer.bias)
    np.testing.assert_allclose(np.asarray(out2), np.asarray(ref2),
                               rtol=2e-3, atol=2e-3)

    # Exercise the size-aware grid fallback too (used when the layer scales up),
    # so that code path is also compile- and correctness-checked.
    outg3 = jax.block_until_ready(_forward_grid(x3, layer.weights, layer.bias))
    np.testing.assert_allclose(np.asarray(outg3), np.asarray(out3),
                               rtol=2e-3, atol=2e-3)
    outg2 = jax.block_until_ready(_forward_grid(x2, layer.weights, layer.bias))
    np.testing.assert_allclose(np.asarray(outg2), np.asarray(out2),
                               rtol=2e-3, atol=2e-3)

    print("KERNEL_OK")
</pallas_src>

<mosaic_0001>
module attributes {stable_mosaic.version = 11 : i64} {
  func.func @_ensemble_single_step_kernel(%arg0: i32, %arg1: memref<4x16x32xf32, #tpu.memory_space<vmem>>, %arg2: memref<4x32x128xf32, #tpu.memory_space<vmem>>, %arg3: memref<4x1x128xf32, #tpu.memory_space<vmem>>, %arg4: memref<4x16x128xf32, #tpu.memory_space<vmem>>) attributes {dimension_semantics = [#tpu.dimension_semantics<arbitrary>], iteration_bounds = array<i64: 1>, scalar_prefetch = 0 : i64, scratch_operands = 0 : i64, tpu.core_type = #tpu.core_type<tc>, window_params = [{pipeline_mode = #tpu.pipeline_mode<synchronous>, transform_indices = @transform_0, window_bounds = array<i64: 4, 16, 32>}, {pipeline_mode = #tpu.pipeline_mode<synchronous>, transform_indices = @transform_1, window_bounds = array<i64: 4, 32, 128>}, {pipeline_mode = #tpu.pipeline_mode<synchronous>, transform_indices = @transform_2, window_bounds = array<i64: 4, 1, 128>}, {pipeline_mode = #tpu.pipeline_mode<synchronous>, transform_indices = @transform_3, window_bounds = array<i64: 4, 16, 128>}]} {
    %c0 = arith.constant 0 : index
    %c0_0 = arith.constant 0 : index
    %c0_1 = arith.constant 0 : index
    %0 = vector.load %arg1[%c0, %c0_0, %c0_1] : memref<4x16x32xf32, #tpu.memory_space<vmem>>, vector<1x16x32xf32>
    %1 = vector.shape_cast %0 : vector<1x16x32xf32> to vector<16x32xf32>
    %c0_2 = arith.constant 0 : index
    %c0_3 = arith.constant 0 : index
    %c0_4 = arith.constant 0 : index
    %2 = vector.load %arg2[%c0_2, %c0_3, %c0_4] : memref<4x32x128xf32, #tpu.memory_space<vmem>>, vector<1x32x128xf32>
    %3 = vector.shape_cast %2 : vector<1x32x128xf32> to vector<32x128xf32>
    %cst = arith.constant dense<0.000000e+00> : vector<16x128xf32>
    %4 = tpu.matmul %1, %3, %cst {dimension_numbers = #tpu.dot_dimension_numbers<[1], [0], [0], [1], [0, 0, 1, 1], [], []>} : vector<16x32xf32>, vector<32x128xf32>, vector<16x128xf32> -> vector<16x128xf32>
    %c0_5 = arith.constant 0 : index
    %c0_6 = arith.constant 0 : index
    %c0_7 = arith.constant 0 : index
    %5 = vector.load %arg3[%c0_5, %c0_6, %c0_7] : memref<4x1x128xf32, #tpu.memory_space<vmem>>, vector<1x1x128xf32>
    %6 = vector.shape_cast %5 : vector<1x1x128xf32> to vector<1x128xf32>
    %7 = vector.broadcast %6 : vector<1x128xf32> to vector<16x128xf32>
    %8 = arith.addf %4, %7 : vector<16x128xf32>
    %c0_8 = arith.constant 0 : index
    %c0_9 = arith.constant 0 : index
    %c0_10 = arith.constant 0 : index
    %9 = vector.load %arg4[%c0_8, %c0_9, %c0_10] : memref<4x16x128xf32, #tpu.memory_space<vmem>>, vector<1x16x128xf32>
    %10 = vector.shape_cast %9 : vector<1x16x128xf32> to vector<16x128xf32>
    %11 = vector.shape_cast %8 : vector<16x128xf32> to vector<1x16x128xf32>
    tpu.vector_store %arg4[%c0_8, %c0_9, %c0_10], %11 {strides = array<i32>} : memref<4x16x128xf32, #tpu.memory_space<vmem>>, vector<1x16x128xf32>,
    %c1 = arith.constant 1 : index
    %c0_11 = arith.constant 0 : index
    %c0_12 = arith.constant 0 : index
    %12 = vector.load %arg1[%c1, %c0_11, %c0_12] : memref<4x16x32xf32, #tpu.memory_space<vmem>>, vector<1x16x32xf32>
    %13 = vector.shape_cast %12 : vector<1x16x32xf32> to vector<16x32xf32>
    %c1_13 = arith.constant 1 : index
    %c0_14 = arith.constant 0 : index
    %c0_15 = arith.constant 0 : index
    %14 = vector.load %arg2[%c1_13, %c0_14, %c0_15] : memref<4x32x128xf32, #tpu.memory_space<vmem>>, vector<1x32x128xf32>
    %15 = vector.shape_cast %14 : vector<1x32x128xf32> to vector<32x128xf32>
    %cst_16 = arith.constant dense<0.000000e+00> : vector<16x128xf32>
    %16 = tpu.matmul %13, %15, %cst_16 {dimension_numbers = #tpu.dot_dimension_numbers<[1], [0], [0], [1], [0, 0, 1, 1], [], []>} : vector<16x32xf32>, vector<32x128xf32>, vector<16x128xf32> -> vector<16x128xf32>
    %c1_17 = arith.constant 1 : index
    %c0_18 = arith.constant 0 : index
    %c0_19 = arith.constant 0 : index
    %17 = vector.load %arg3[%c1_17, %c0_18, %c0_19] : memref<4x1x128xf32, #tpu.memory_space<vmem>>, vector<1x1x128xf32>
    %18 = vector.shape_cast %17 : vector<1x1x128xf32> to vector<1x128xf32>
    %19 = vector.broadcast %18 : vector<1x128xf32> to vector<16x128xf32>
    %20 = arith.addf %16, %19 : vector<16x128xf32>
    %c1_20 = arith.constant 1 : index
    %c0_21 = arith.constant 0 : index
    %c0_22 = arith.constant 0 : index
    %21 = vector.load %arg4[%c1_20, %c0_21, %c0_22] : memref<4x16x128xf32, #tpu.memory_space<vmem>>, vector<1x16x128xf32>
    %22 = vector.shape_cast %21 : vector<1x16x128xf32> to vector<16x128xf32>
    %23 = vector.shape_cast %20 : vector<16x128xf32> to vector<1x16x128xf32>
    tpu.vector_store %arg4[%c1_20, %c0_21, %c0_22], %23 {strides = array<i32>} : memref<4x16x128xf32, #tpu.memory_space<vmem>>, vector<1x16x128xf32>,
    %c2 = arith.constant 2 : index
    %c0_23 = arith.constant 0 : index
    %c0_24 = arith.constant 0 : index
    %24 = vector.load %arg1[%c2, %c0_23, %c0_24] : memref<4x16x32xf32, #tpu.memory_space<vmem>>, vector<1x16x32xf32>
    %25 = vector.shape_cast %24 : vector<1x16x32xf32> to vector<16x32xf32>
    %c2_25 = arith.constant 2 : index
    %c0_26 = arith.constant 0 : index
    %c0_27 = arith.constant 0 : index
    %26 = vector.load %arg2[%c2_25, %c0_26, %c0_27] : memref<4x32x128xf32, #tpu.memory_space<vmem>>, vector<1x32x128xf32>
    %27 = vector.shape_cast %26 : vector<1x32x128xf32> to vector<32x128xf32>
    %cst_28 = arith.constant dense<0.000000e+00> : vector<16x128xf32>
    %28 = tpu.matmul %25, %27, %cst_28 {dimension_numbers = #tpu.dot_dimension_numbers<[1], [0], [0], [1], [0, 0, 1, 1], [], []>} : vector<16x32xf32>, vector<32x128xf32>, vector<16x128xf32> -> vector<16x128xf32>
    %c2_29 = arith.constant 2 : index
    %c0_30 = arith.constant 0 : index
    %c0_31 = arith.constant 0 : index
    %29 = vector.load %arg3[%c2_29, %c0_30, %c0_31] : memref<4x1x128xf32, #tpu.memory_space<vmem>>, vector<1x1x128xf32>
    %30 = vector.shape_cast %29 : vector<1x1x128xf32> to vector<1x128xf32>
    %31 = vector.broadcast %30 : vector<1x128xf32> to vector<16x128xf32>
    %32 = arith.addf %28, %31 : vector<16x128xf32>
    %c2_32 = arith.constant 2 : index
    %c0_33 = arith.constant 0 : index
    %c0_34 = arith.constant 0 : index
    %33 = vector.load %arg4[%c2_32, %c0_33, %c0_34] : memref<4x16x128xf32, #tpu.memory_space<vmem>>, vector<1x16x128xf32>
    %34 = vector.shape_cast %33 : vector<1x16x128xf32> to vector<16x128xf32>
    %35 = vector.shape_cast %32 : vector<16x128xf32> to vector<1x16x128xf32>
    tpu.vector_store %arg4[%c2_32, %c0_33, %c0_34], %35 {strides = array<i32>} : memref<4x16x128xf32, #tpu.memory_space<vmem>>, vector<1x16x128xf32>,
    %c3 = arith.constant 3 : index
    %c0_35 = arith.constant 0 : index
    %c0_36 = arith.constant 0 : index
    %36 = vector.load %arg1[%c3, %c0_35, %c0_36] : memref<4x16x32xf32, #tpu.memory_space<vmem>>, vector<1x16x32xf32>
    %37 = vector.shape_cast %36 : vector<1x16x32xf32> to vector<16x32xf32>
    %c3_37 = arith.constant 3 : index
    %c0_38 = arith.constant 0 : index
    %c0_39 = arith.constant 0 : index
    %38 = vector.load %arg2[%c3_37, %c0_38, %c0_39] : memref<4x32x128xf32, #tpu.memory_space<vmem>>, vector<1x32x128xf32>
    %39 = vector.shape_cast %38 : vector<1x32x128xf32> to vector<32x128xf32>
    %cst_40 = arith.constant dense<0.000000e+00> : vector<16x128xf32>
    %40 = tpu.matmul %37, %39, %cst_40 {dimension_numbers = #tpu.dot_dimension_numbers<[1], [0], [0], [1], [0, 0, 1, 1], [], []>} : vector<16x32xf32>, vector<32x128xf32>, vector<16x128xf32> -> vector<16x128xf32>
    %c3_41 = arith.constant 3 : index
    %c0_42 = arith.constant 0 : index
    %c0_43 = arith.constant 0 : index
    %41 = vector.load %arg3[%c3_41, %c0_42, %c0_43] : memref<4x1x128xf32, #tpu.memory_space<vmem>>, vector<1x1x128xf32>
    %42 = vector.shape_cast %41 : vector<1x1x128xf32> to vector<1x128xf32>
    %43 = vector.broadcast %42 : vector<1x128xf32> to vector<16x128xf32>
    %44 = arith.addf %40, %43 : vector<16x128xf32>
    %c3_44 = arith.constant 3 : index
    %c0_45 = arith.constant 0 : index
    %c0_46 = arith.constant 0 : index
    %45 = vector.load %arg4[%c3_44, %c0_45, %c0_46] : memref<4x16x128xf32, #tpu.memory_space<vmem>>, vector<1x16x128xf32>
    %46 = vector.shape_cast %45 : vector<1x16x128xf32> to vector<16x128xf32>
    %47 = vector.shape_cast %44 : vector<16x128xf32> to vector<1x16x128xf32>
    tpu.vector_store %arg4[%c3_44, %c0_45, %c0_46], %47 {strides = array<i32>} : memref<4x16x128xf32, #tpu.memory_space<vmem>>, vector<1x16x128xf32>,
    return
  }
  func.func @transform_0(%arg0: i32) -> (i32, i32, i32) {
    %c0_i32 = arith.constant 0 : i32
    %c0_i32_0 = arith.constant 0 : i32
    %c0_i32_1 = arith.constant 0 : i32
    %c0_i32_2 = arith.constant 0 : i32
    return %c0_i32, %c0_i32_0, %c0_i32_1 : i32, i32, i32
  }
  func.func @transform_1(%arg0: i32) -> (i32, i32, i32) {
    %c0_i32 = arith.constant 0 : i32
    %c0_i32_0 = arith.constant 0 : i32
    %c0_i32_1 = arith.constant 0 : i32
    %c0_i32_2 = arith.constant 0 : i32
    return %c0_i32, %c0_i32_0, %c0_i32_1 : i32, i32, i32
  }
  func.func @transform_2(%arg0: i32) -> (i32, i32, i32) {
    %c0_i32 = arith.constant 0 : i32
    %c0_i32_0 = arith.constant 0 : i32
    %c0_i32_1 = arith.constant 0 : i32
    %c0_i32_2 = arith.constant 0 : i32
    return %c0_i32, %c0_i32_0, %c0_i32_1 : i32, i32, i32
  }
  func.func @transform_3(%arg0: i32) -> (i32, i32, i32) {
    %c0_i32 = arith.constant 0 : i32
    %c0_i32_0 = arith.constant 0 : i32
    %c0_i32_1 = arith.constant 0 : i32
    %c0_i32_2 = arith.constant 0 : i32
    return %c0_i32, %c0_i32_0, %c0_i32_1 : i32, i32, i32
  }
}

</mosaic_0001>

<llo_original>
// kernel: _forward_per_model_single.1
$region0: #{_forward_per_model_single.1}
  #allocation0 [shape = 'u32[]', space=smem, size = 0x4, offset = 0x4, fixed_abs, tag = 'smem constant byte address 0x4 - core index']
  #allocation1 [shape = 'u32[144,128]{1,0:T(1,128)}', space=vmem, size = 0x12000, scoped, tag = 'internal scratch']
  %s0 = inlined_call_operand.hbm [shape: f32[4,16,32], index: 0, kind: input, shape index: {}]
  %s1 = inlined_call_operand.hbm [shape: f32[4,32,128], index: 1, kind: input, shape index: {}]
  %s2 = inlined_call_operand.vmem [shape: f32[4,1,128], index: 2, kind: input, shape index: {}]
  %s3 = inlined_call_operand.hbm [shape: f32[4,16,128], index: 3, kind: output, shape index: {}]
  %s4 = sld [smem:[#allocation0]]
  $region30: #{_forward_per_model_single.1} parent=0
    _
  %s6 = ssub.s32 1, %s4
  %s7 = scalar_select 0, %s6, %s4
  $region1: #{_forward_per_model_single.1} parent=0
    #allocation2 [shape = 'u8[32768]{0}', space=vmem, size = 0x8000, scoped, tag = 'input window, operand 0, single buffered']
    #allocation3 [shape = 's32[1]{0}', space=sflag, size = 0x4, scoped, tag = 'scoped memory for _forward_per_model_single.1']
    #allocation4 [shape = 's32[1]{0}', space=sflag, size = 0x4, scoped, tag = 'scoped memory for _forward_per_model_single.1']
    #allocation5 [shape = 'u8[65536]{0}', space=vmem, size = 0x10000, scoped, tag = 'input window, operand 1, single buffered']
    #allocation6 [shape = 's32[1]{0}', space=sflag, size = 0x4, scoped, tag = 'scoped memory for _forward_per_model_single.1']
    #allocation7 [shape = 'u8[32768]{0}', space=vmem, size = 0x8000, scoped, tag = 'output window, operand 0, single buffered']
    %8 = vsyncpa [#allocation3], 0
    %9 = vsyncpa [#allocation6], 0
    %10 = vsyncpa [#allocation4], 0
    // Predicated region
    $region2: #{_forward_per_model_single.1} parent=1 // pred_check
      _
    $region3: #{_forward_per_model_single.1} parent=1 // pred_check_branch
      %12 = sbr.rel (0) target = $region5
    $region4: #{_forward_per_model_single.1} parent=1 // pred_region
      %s14 = ssub.s32 1024, 1024
      %15 = vsyncadd [#allocation3], %s14
      %s16 = sshll.u32 [#allocation2], 4
      %s17 = int_to_ptr.vmem [resolvable:$true] %s16
      %22 = dma.hbm_to_vmem [thread:$0]  %s0, 1024, %s17, [#allocation3], 128, 128, 8
    $region5: #{_forward_per_model_single.1} parent=1 // pred_fallthru
      _
    // Predicated region
    $region6: #{_forward_per_model_single.1} parent=1 // pred_check
      _
    $region7: #{_forward_per_model_single.1} parent=1 // pred_check_branch
      %24 = sbr.rel (0) target = $region9
    $region8: #{_forward_per_model_single.1} parent=1 // pred_region
      %s26 = ssub.s32 2048, 2048
      %27 = vsyncadd [#allocation6], %s26
      %s28 = sshll.u32 [#allocation5], 4
      %s29 = int_to_ptr.vmem [resolvable:$true] %s28
      %34 = dma.hbm_to_vmem [thread:$0]  %s1, 2048, %s29, [#allocation6], 128, 128, 8
    $region9: #{_forward_per_model_single.1} parent=1 // pred_fallthru
      _
    // Predicated region
    $region10: #{_forward_per_model_single.1} parent=1 // pred_check
      _
    $region11: #{_forward_per_model_single.1} parent=1 // pred_check_branch
      %36 = sbr.rel (0) target = $region13
    $region12: #{_forward_per_model_single.1} parent=1 // pred_region
      _
    $region13: #{_forward_per_model_single.1} parent=1 // pred_fallthru
      _
    // Predicated region
    $region14: #{_forward_per_model_single.1} parent=1 // pred_check
      _
    $region15: #{_forward_per_model_single.1} parent=1 // pred_check_branch
      %38 = sbr.rel (0) target = $region17
    $region16: #{_forward_per_model_single.1} parent=1 // pred_region
      %39 = dma.done [#allocation3], 1024
    $region17: #{_forward_per_model_single.1} parent=1 // pred_fallthru
      _
    // Predicated region
    $region18: #{_forward_per_model_single.1} parent=1 // pred_check
      _
    $region19: #{_forward_per_model_single.1} parent=1 // pred_check_branch
      %41 = sbr.rel (0) target = $region21
    $region20: #{_forward_per_model_single.1} parent=1 // pred_region
      %42 = dma.done [#allocation6], 2048
    $region21: #{_forward_per_model_single.1} parent=1 // pred_fallthru
      _
    %v43 = vld [vmem:[#allocation2] sm:$0xff]
    %v44 = vld [vmem:[#allocation2 + $0x8] sm:$0xff]
    %v45 = vld [vmem:[#allocation5] sm:$0xff]
    %v46 = vld [vmem:[#allocation5 + $0x8] sm:$0xff]
    %v47 = vld [vmem:[#allocation5 + $0x10] sm:$0xff]
    %v48 = vld [vmem:[#allocation5 + $0x18] sm:$0xff]
    %v49 = vld [vmem:[%s2] sm:$0x1]
    %v51 = vlaneseq
    %v52 = vshrl.u32 %v51, 7
    %v53 = vsub.s32 0, %v52
    %v54 = vrot.slane %v49, %v53
    %vm56 = vcmask 261120
    %v58 = vsel %vm56, %v43, 0
    %v61 = vsel %vm56, %v44, 0
    %63 = vmatprep.subr.mxu0 0.0
    %64 = vmatpush1.msra.mxu0 %v45
    %65 = vmatprep.subr.mxu0 0.0
    %66 = vmatpush1.msra.mxu0 %v46
    %67 = vmatprep.subr.mxu0 0.0
    %68 = vmatpush1.msra.mxu0 %v47
    %69 = vmatprep.subr.mxu0 0.0
    %70 = vmatpush1.msra.mxu0 %v48
    %71 = vmatprep.subr.mxu0 0.0
    %72 = vmatpush1.msra.mxu0 0.0
    %73 = vmatprep.subr.mxu0 0.0
    %74 = vmatpush1.msra.mxu0 0.0
    %75 = vmatprep.subr.mxu0 0.0
    %76 = vmatpush1.msra.mxu0 0.0
    %77 = vmatprep.subr.mxu0 0.0
    %78 = vmatpush1.msra.mxu0 0.0
    %79 = vmatprep.subr.mxu0 0.0
    %80 = vmatpush1.msra.mxu0 0.0
    %81 = vmatprep.subr.mxu0 0.0
    %82 = vmatpush1.msra.mxu0 0.0
    %83 = vmatprep.subr.mxu0 0.0
    %84 = vmatpush1.msra.mxu0 0.0
    %85 = vmatprep.subr.mxu0 0.0
    %86 = vmatpush1.msra.mxu0 0.0
    %87 = vmatprep.subr.mxu0 0.0
    %88 = vmatpush1.msra.mxu0 0.0
    %89 = vmatprep.subr.mxu0 0.0
    %90 = vmatpush1.msra.mxu0 0.0
    %91 = vmatprep.subr.mxu0 0.0
    %92 = vmatpush1.msra.mxu0 0.0
    %93 = vmatprep.subr.mxu0 0.0
    %94 = vmatpush1.msra.mxu0 0.0
    %95 = vmatprep.subr.mxu0 0.0
    %96 = vmatpush1.msra.mxu0 0.0
    %97 = vmatprep.subr.mxu0 0.0
    %98 = vmatpush1.msra.mxu0 0.0
    %99 = vmatprep.subr.mxu0 0.0
    %100 = vmatpush1.msra.mxu0 0.0
    %101 = vmatprep.subr.mxu0 0.0
    %102 = vmatpush1.msra.mxu0 0.0
    %103 = vmatprep.subr.mxu0 0.0
    %104 = vmatpush1.msra.mxu0 0.0
    %105 = vmatprep.subr.mxu0 0.0
    %106 = vmatpush1.msra.mxu0 0.0
    %107 = vmatprep.subr.mxu0 0.0
    %108 = vmatpush1.msra.mxu0 0.0
    %109 = vmatprep.subr.mxu0 0.0
    %110 = vmatpush1.msra.mxu0 0.0
    %111 = vmatprep.subr.mxu0 0.0
    %112 = vmatpush1.msra.mxu0 0.0
    %113 = vmatprep.subr.mxu0 0.0
    %114 = vmatpush1.msra.mxu0 0.0
    %115 = vmatprep.subr.mxu0 0.0
    %116 = vmatpush1.msra.mxu0 0.0
    %117 = vmatprep.subr.mxu0 0.0
    %118 = vmatpush1.msra.mxu0 0.0
    %119 = vmatprep.subr.mxu0 0.0
    %120 = vmatpush1.msra.mxu0 0.0
    %121 = vmatprep.subr.mxu0 0.0
    %122 = vmatpush1.msra.mxu0 0.0
    %123 = vmatprep.subr.mxu0 0.0
    %124 = vmatpush1.msra.mxu0 0.0
    %125 = vmatprep.subr.mxu0 0.0
    %126 = vmatpush1.msra.mxu0 0.0
    %127 = vmatprep.mubr.f32.mxu0 0.0
    %128 = vmatmul.mubr.f32.gmra.mrb[0].mxu0 %v58
    %v129 = vpop.f32.mrb[0].mxu0
    %v130 = vadd.f32 %v54, %v129
    %v131 = vpop.f32.mrb[0].mxu0
    %132 = vmatprep.mubr.f32.mxu0 0.0
    %133 = vmatmul.mubr.f32.gmra.mrb[0].mxu0 %v61
    %v134 = vpop.f32.mrb[0].mxu0
    %v135 = vadd.f32 %v54, %v134
    %v136 = vpop.f32.mrb[0].mxu0
    %137 = vdwg.mxu0
    %138 = vst [vmem:[#allocation7] sm:$0xff] %v130
    %139 = vst [vmem:[#allocation7 + $0x8] sm:$0xff] %v135
    %s140 = scalar_lea.vmem [#allocation2], 16
    %v141 = vld [vmem:[%s140] sm:$0xff]
    %v142 = vld [vmem:[%s140 + $0x8] sm:$0xff]
    %s143 = scalar_lea.vmem [#allocation5], 32
    %v144 = vld [vmem:[%s143] sm:$0xff]
    %v145 = vld [vmem:[%s143 + $0x8] sm:$0xff]
    %v146 = vld [vmem:[%s143 + $0x10] sm:$0xff]
    %v147 = vld [vmem:[%s143 + $0x18] sm:$0xff]
    %s148 = scalar_lea.vmem %s2, 1
    %v149 = vld [vmem:[%s148] sm:$0x1]
    %v151 = vlaneseq
    %v152 = vshrl.u32 %v151, 7
    %v153 = vsub.s32 0, %v152
    %v154 = vrot.slane %v149, %v153
    %v157 = vsel %vm56, %v141, 0
    %v160 = vsel %vm56, %v142, 0
    %162 = vmatprep.subr.mxu0 0.0
    %163 = vmatpush1.msra.mxu0 %v144
    %164 = vmatprep.subr.mxu0 0.0
    %165 = vmatpush1.msra.mxu0 %v145
    %166 = vmatprep.subr.mxu0 0.0
    %167 = vmatpush1.msra.mxu0 %v146
    %168 = vmatprep.subr.mxu0 0.0
    %169 = vmatpush1.msra.mxu0 %v147
    %170 = vmatprep.subr.mxu0 0.0
    %171 = vmatpush1.msra.mxu0 0.0
    %172 = vmatprep.subr.mxu0 0.0
    %173 = vmatpush1.msra.mxu0 0.0
    %174 = vmatprep.subr.mxu0 0.0
    %175 = vmatpush1.msra.mxu0 0.0
    %176 = vmatprep.subr.mxu0 0.0
    %177 = vmatpush1.msra.mxu0 0.0
    %178 = vmatprep.subr.mxu0 0.0
    %179 = vmatpush1.msra.mxu0 0.0
    %180 = vmatprep.subr.mxu0 0.0
    %181 = vmatpush1.msra.mxu0 0.0
    %182 = vmatprep.subr.mxu0 0.0
    %183 = vmatpush1.msra.mxu0 0.0
    %184 = vmatprep.subr.mxu0 0.0
    %185 = vmatpush1.msra.mxu0 0.0
    %186 = vmatprep.subr.mxu0 0.0
    %187 = vmatpush1.msra.mxu0 0.0
    %188 = vmatprep.subr.mxu0 0.0
    %189 = vmatpush1.msra.mxu0 0.0
    %190 = vmatprep.subr.mxu0 0.0
    %191 = vmatpush1.msra.mxu0 0.0
    %192 = vmatprep.subr.mxu0 0.0
    %193 = vmatpush1.msra.mxu0 0.0
    %194 = vmatprep.subr.mxu0 0.0
    %195 = vmatpush1.msra.mxu0 0.0
    %196 = vmatprep.subr.mxu0 0.0
    %197 = vmatpush1.msra.mxu0 0.0
    %198 = vmatprep.subr.mxu0 0.0
    %199 = vmatpush1.msra.mxu0 0.0
    %200 = vmatprep.subr.mxu0 0.0
    %201 = vmatpush1.msra.mxu0 0.0
    %202 = vmatprep.subr.mxu0 0.0
    %203 = vmatpush1.msra.mxu0 0.0
    %204 = vmatprep.subr.mxu0 0.0
    %205 = vmatpush1.msra.mxu0 0.0
    %206 = vmatprep.subr.mxu0 0.0
    %207 = vmatpush1.msra.mxu0 0.0
    %208 = vmatprep.subr.mxu0 0.0
    %209 = vmatpush1.msra.mxu0 0.0
    %210 = vmatprep.subr.mxu0 0.0
    %211 = vmatpush1.msra.mxu0 0.0
    %212 = vmatprep.subr.mxu0 0.0
    %213 = vmatpush1.msra.mxu0 0.0
    %214 = vmatprep.subr.mxu0 0.0
    %215 = vmatpush1.msra.mxu0 0.0
    %216 = vmatprep.subr.mxu0 0.0
    %217 = vmatpush1.msra.mxu0 0.0
    %218 = vmatprep.subr.mxu0 0.0
    %219 = vmatpush1.msra.mxu0 0.0
    %220 = vmatprep.subr.mxu0 0.0
    %221 = vmatpush1.msra.mxu0 0.0
    %222 = vmatprep.subr.mxu0 0.0
    %223 = vmatpush1.msra.mxu0 0.0
    %224 = vmatprep.subr.mxu0 0.0
    %225 = vmatpush1.msra.mxu0 0.0
    %226 = vmatprep.mubr.f32.mxu0 0.0
    %227 = vmatmul.mubr.f32.gmra.mrb[0].mxu0 %v157
    %v228 = vpop.f32.mrb[0].mxu0
    %v229 = vadd.f32 %v154, %v228
    %v230 = vpop.f32.mrb[0].mxu0
    %231 = vmatprep.mubr.f32.mxu0 0.0
    %232 = vmatmul.mubr.f32.gmra.mrb[0].mxu0 %v160
    %v233 = vpop.f32.mrb[0].mxu0
    %v234 = vadd.f32 %v154, %v233
    %v235 = vpop.f32.mrb[0].mxu0
    %236 = vdwg.mxu0
    %s237 = scalar_lea.vmem [#allocation7], 16
    %238 = vst [vmem:[%s237] sm:$0xff] %v229
    %239 = vst [vmem:[%s237 + $0x8] sm:$0xff] %v234
    %s240 = scalar_lea.vmem [#allocation2], 32
    %v241 = vld [vmem:[%s240] sm:$0xff]
    %v242 = vld [vmem:[%s240 + $0x8] sm:$0xff]
    %s243 = scalar_lea.vmem [#allocation5], 64
    %v244 = vld [vmem:[%s243] sm:$0xff]
    %v245 = vld [vmem:[%s243 + $0x8] sm:$0xff]
    %v246 = vld [vmem:[%s243 + $0x10] sm:$0xff]
    %v247 = vld [vmem:[%s243 + $0x18] sm:$0xff]
    %s248 = scalar_lea.vmem %s2, 2
    %v249 = vld [vmem:[%s248] sm:$0x1]
    %v251 = vlaneseq
    %v252 = vshrl.u32 %v251, 7
    %v253 = vsub.s32 0, %v252
    %v254 = vrot.slane %v249, %v253
    %v257 = vsel %vm56, %v241, 0
    %v260 = vsel %vm56, %v242, 0
    %262 = vmatprep.subr.mxu0 0.0
    %263 = vmatpush1.msra.mxu0 %v244
    %264 = vmatprep.subr.mxu0 0.0
    %265 = vmatpush1.msra.mxu0 %v245
    %266 = vmatprep.subr.mxu0 0.0
    %267 = vmatpush1.msra.mxu0 %v246
    %268 = vmatprep.subr.mxu0 0.0
    %269 = vmatpush1.msra.mxu0 %v247
    %270 = vmatprep.subr.mxu0 0.0
    %271 = vmatpush1.msra.mxu0 0.0
    %272 = vmatprep.subr.mxu0 0.0
    %273 = vmatpush1.msra.mxu0 0.0
    %274 = vmatprep.subr.mxu0 0.0
    %275 = vmatpush1.msra.mxu0 0.0
    %276 = vmatprep.subr.mxu0 0.0
    %277 = vmatpush1.msra.mxu0 0.0
    %278 = vmatprep.subr.mxu0 0.0
    %279 = vmatpush1.msra.mxu0 0.0
    %280 = vmatprep.subr.mxu0 0.0
    %281 = vmatpush1.msra.mxu0 0.0
    %282 = vmatprep.subr.mxu0 0.0
    %283 = vmatpush1.msra.mxu0 0.0
    %284 = vmatprep.subr.mxu0 0.0
    %285 = vmatpush1.msra.mxu0 0.0
    %286 = vmatprep.subr.mxu0 0.0
    %287 = vmatpush1.msra.mxu0 0.0
    %288 = vmatprep.subr.mxu0 0.0
    %289 = vmatpush1.msra.mxu0 0.0
    %290 = vmatprep.subr.mxu0 0.0
    %291 = vmatpush1.msra.mxu0 0.0
    %292 = vmatprep.subr.mxu0 0.0
    %293 = vmatpush1.msra.mxu0 0.0
    %294 = vmatprep.subr.mxu0 0.0
    %295 = vmatpush1.msra.mxu0 0.0
    %296 = vmatprep.subr.mxu0 0.0
    %297 = vmatpush1.msra.mxu0 0.0
    %298 = vmatprep.subr.mxu0 0.0
    %299 = vmatpush1.msra.mxu0 0.0
    %300 = vmatprep.subr.mxu0 0.0
    %301 = vmatpush1.msra.mxu0 0.0
    %302 = vmatprep.subr.mxu0 0.0
    %303 = vmatpush1.msra.mxu0 0.0
    %304 = vmatprep.subr.mxu0 0.0
    %305 = vmatpush1.msra.mxu0 0.0
    %306 = vmatprep.subr.mxu0 0.0
    %307 = vmatpush1.msra.mxu0 0.0
    %308 = vmatprep.subr.mxu0 0.0
    %309 = vmatpush1.msra.mxu0 0.0
    %310 = vmatprep.subr.mxu0 0.0
    %311 = vmatpush1.msra.mxu0 0.0
    %312 = vmatprep.subr.mxu0 0.0
    %313 = vmatpush1.msra.mxu0 0.0
    %314 = vmatprep.subr.mxu0 0.0
    %315 = vmatpush1.msra.mxu0 0.0
    %316 = vmatprep.subr.mxu0 0.0
    %317 = vmatpush1.msra.mxu0 0.0
    %318 = vmatprep.subr.mxu0 0.0
    %319 = vmatpush1.msra.mxu0 0.0
    %320 = vmatprep.subr.mxu0 0.0
    %321 = vmatpush1.msra.mxu0 0.0
    %322 = vmatprep.subr.mxu0 0.0
    %323 = vmatpush1.msra.mxu0 0.0
    %324 = vmatprep.subr.mxu0 0.0
    %325 = vmatpush1.msra.mxu0 0.0
    %326 = vmatprep.mubr.f32.mxu0 0.0
    %327 = vmatmul.mubr.f32.gmra.mrb[0].mxu0 %v257
    %v328 = vpop.f32.mrb[0].mxu0
    %v329 = vadd.f32 %v254, %v328
    %v330 = vpop.f32.mrb[0].mxu0
    %331 = vmatprep.mubr.f32.mxu0 0.0
    %332 = vmatmul.mubr.f32.gmra.mrb[0].mxu0 %v260
    %v333 = vpop.f32.mrb[0].mxu0
    %v334 = vadd.f32 %v254, %v333
    %v335 = vpop.f32.mrb[0].mxu0
    %336 = vdwg.mxu0
    %s337 = scalar_lea.vmem [#allocation7], 32
    %338 = vst [vmem:[%s337] sm:$0xff] %v329
    %339 = vst [vmem:[%s337 + $0x8] sm:$0xff] %v334
    %s340 = scalar_lea.vmem [#allocation2], 48
    %v341 = vld [vmem:[%s340] sm:$0xff]
    %v342 = vld [vmem:[%s340 + $0x8] sm:$0xff]
    %s343 = scalar_lea.vmem [#allocation5], 96
    %v344 = vld [vmem:[%s343] sm:$0xff]
    %v345 = vld [vmem:[%s343 + $0x8] sm:$0xff]
    %v346 = vld [vmem:[%s343 + $0x10] sm:$0xff]
    %v347 = vld [vmem:[%s343 + $0x18] sm:$0xff]
    %s348 = scalar_lea.vmem %s2, 3
    %v349 = vld [vmem:[%s348] sm:$0x1]
    %v351 = vlaneseq
    %v352 = vshrl.u32 %v351, 7
    %v353 = vsub.s32 0, %v352
    %v354 = vrot.slane %v349, %v353
    %v357 = vsel %vm56, %v341, 0
    %v360 = vsel %vm56, %v342, 0
    %362 = vmatprep.subr.mxu0 0.0
    %363 = vmatpush1.msra.mxu0 %v344
    %364 = vmatprep.subr.mxu0 0.0
    %365 = vmatpush1.msra.mxu0 %v345
    %366 = vmatprep.subr.mxu0 0.0
    %367 = vmatpush1.msra.mxu0 %v346
    %368 = vmatprep.subr.mxu0 0.0
    %369 = vmatpush1.msra.mxu0 %v347
    %370 = vmatprep.subr.mxu0 0.0
    %371 = vmatpush1.msra.mxu0 0.0
    %372 = vmatprep.subr.mxu0 0.0
    %373 = vmatpush1.msra.mxu0 0.0
    %374 = vmatprep.subr.mxu0 0.0
    %375 = vmatpush1.msra.mxu0 0.0
    %376 = vmatprep.subr.mxu0 0.0
    %377 = vmatpush1.msra.mxu0 0.0
    %378 = vmatprep.subr.mxu0 0.0
    %379 = vmatpush1.msra.mxu0 0.0
    %380 = vmatprep.subr.mxu0 0.0
    %381 = vmatpush1.msra.mxu0 0.0
    %382 = vmatprep.subr.mxu0 0.0
    %383 = vmatpush1.msra.mxu0 0.0
    %384 = vmatprep.subr.mxu0 0.0
    %385 = vmatpush1.msra.mxu0 0.0
    %386 = vmatprep.subr.mxu0 0.0
    %387 = vmatpush1.msra.mxu0 0.0
    %388 = vmatprep.subr.mxu0 0.0
    %389 = vmatpush1.msra.mxu0 0.0
    %390 = vmatprep.subr.mxu0 0.0
    %391 = vmatpush1.msra.mxu0 0.0
    %392 = vmatprep.subr.mxu0 0.0
    %393 = vmatpush1.msra.mxu0 0.0
    %394 = vmatprep.subr.mxu0 0.0
    %395 = vmatpush1.msra.mxu0 0.0
    %396 = vmatprep.subr.mxu0 0.0
    %397 = vmatpush1.msra.mxu0 0.0
    %398 = vmatprep.subr.mxu0 0.0
    %399 = vmatpush1.msra.mxu0 0.0
    %400 = vmatprep.subr.mxu0 0.0
    %401 = vmatpush1.msra.mxu0 0.0
    %402 = vmatprep.subr.mxu0 0.0
    %403 = vmatpush1.msra.mxu0 0.0
    %404 = vmatprep.subr.mxu0 0.0
    %405 = vmatpush1.msra.mxu0 0.0
    %406 = vmatprep.subr.mxu0 0.0
    %407 = vmatpush1.msra.mxu0 0.0
    %408 = vmatprep.subr.mxu0 0.0
    %409 = vmatpush1.msra.mxu0 0.0
    %410 = vmatprep.subr.mxu0 0.0
    %411 = vmatpush1.msra.mxu0 0.0
    %412 = vmatprep.subr.mxu0 0.0
    %413 = vmatpush1.msra.mxu0 0.0
    %414 = vmatprep.subr.mxu0 0.0
    %415 = vmatpush1.msra.mxu0 0.0
    %416 = vmatprep.subr.mxu0 0.0
    %417 = vmatpush1.msra.mxu0 0.0
    %418 = vmatprep.subr.mxu0 0.0
    %419 = vmatpush1.msra.mxu0 0.0
    %420 = vmatprep.subr.mxu0 0.0
    %421 = vmatpush1.msra.mxu0 0.0
    %422 = vmatprep.subr.mxu0 0.0
    %423 = vmatpush1.msra.mxu0 0.0
    %424 = vmatprep.subr.mxu0 0.0
    %425 = vmatpush1.msra.mxu0 0.0
    %426 = vmatprep.mubr.f32.mxu0 0.0
    %427 = vmatmul.mubr.f32.gmra.mrb[0].mxu0 %v357
    %v428 = vpop.f32.mrb[0].mxu0
    %v429 = vadd.f32 %v354, %v428
    %v430 = vpop.f32.mrb[0].mxu0
    %431 = vmatprep.mubr.f32.mxu0 0.0
    %432 = vmatmul.mubr.f32.gmra.mrb[0].mxu0 %v360
    %v433 = vpop.f32.mrb[0].mxu0
    %v434 = vadd.f32 %v354, %v433
    %v435 = vpop.f32.mrb[0].mxu0
    %436 = vdwg.mxu0
    %s437 = scalar_lea.vmem [#allocation7], 48
    %438 = vst [vmem:[%s437] sm:$0xff] %v429
    %439 = vst [vmem:[%s437 + $0x8] sm:$0xff] %v434
    // Predicated region
    $region22: #{_forward_per_model_single.1} parent=1 // pred_check
      _
    $region23: #{_forward_per_model_single.1} parent=1 // pred_check_branch
      %441 = sbr.rel (0) target = $region25
    $region24: #{_forward_per_model_single.1} parent=1 // pred_region
      %s443 = ssub.s32 1024, 1024
      %444 = vsyncadd [#allocation4], %s443
      %s445 = sshll.u32 [#allocation7], 4
      %s446 = int_to_ptr.vmem [resolvable:$true] %s445
      %451 = dma.vmem_to_hbm [thread:$0]  %s446, 1024, %s3, [#allocation4], 128, 128, 8
    $region25: #{_forward_per_model_single.1} parent=1 // pred_fallthru
      _
    // Predicated region
    $region26: #{_forward_per_model_single.1} parent=1 // pred_check
      _
    $region27: #{_forward_per_model_single.1} parent=1 // pred_check_branch
      %453 = sbr.rel (0) target = $region29
    $region28: #{_forward_per_model_single.1} parent=1 // pred_region
      %454 = dma.done [#allocation4], 1024
    $region29: #{_forward_per_model_single.1} parent=1 // pred_fallthru
      _
    %455 = vsyncpa [#allocation3], 1
    %456 = vsyncpa [#allocation6], 1
    %457 = vsyncpa [#allocation4], 1

</llo_original>
